<compile_context>
chip_gen: v5e
topology: v5e:2x2
jax: 0.10.0
libtpu: 0.0.40
codegen_flags: <defaults>
</compile_context>

<pallas_src>
from typing import NamedTuple

import jax
import jax.numpy as jnp
from jax.experimental import pallas as pl
from jax.experimental.pallas import tpu as pltpu


def _round_up(x, m):
    return ((x + m - 1) // m) * m


# ----------------------------------------------------------------------------
# Kernels
# ----------------------------------------------------------------------------
def _lr_resident_kernel(x_ref, w_ref, b_ref, o_ref):
    # x_ref: (tm, Dp) bf16, w_ref: (Dp, Cp) bf16 (resident), b_ref: (1, Cp) f32.
    acc = jnp.dot(x_ref[...], w_ref[...], preferred_element_type=jnp.float32)
    o_ref[...] = (acc + b_ref[...]).astype(o_ref.dtype)


def _lr_tiled_kernel(x_ref, w_ref, b_ref, o_ref, acc_ref):
    # x_ref: (tm, tk), w_ref: (tk, tn) (pre-transposed W), b_ref: (1, tn).
    k = pl.program_id(2)

    @pl.when(k == 0)
    def _():
        acc_ref[...] = jnp.zeros_like(acc_ref)

    acc_ref[...] += jnp.dot(x_ref[...], w_ref[...],
                            preferred_element_type=jnp.float32)

    @pl.when(k == pl.num_programs(2) - 1)
    def _():
        # Bias added once in f32, riding the cast to the output dtype.
        o_ref[...] = (acc_ref[...] + b_ref[...]).astype(o_ref.dtype)


# ----------------------------------------------------------------------------
# Parameter preparation (done once, outside the hot path)
# ----------------------------------------------------------------------------
class LRParams(NamedTuple):
    w: jax.Array          # (Dp, Cp), compute dtype, pre-transposed & padded
    b: jax.Array          # (1, Cp), float32, padded
    C: int
    D: int
    Cp: int
    Dp: int
    tn: int
    tk: int
    resident: bool
    compute_dtype: object


def init_lr_params(weight, bias, *, compute_dtype=jnp.bfloat16,
                   tn_max=512, tk_max=1024, resident_w_bytes=12 << 20):
    """Pad / pre-transpose / cast the static nn.Linear parameters once."""
    C, D = weight.shape
    assert bias.shape == (C,)
    itemsize = jnp.dtype(compute_dtype).itemsize

    # Resident-W fast path: whole padded weight lives in VMEM for the call.
    Cp_r = _round_up(C, 128)
    Dp_r = _round_up(D, 128)
    if Cp_r * Dp_r * itemsize <= resident_w_bytes:
        resident = True
        Cp, Dp = Cp_r, Dp_r
        tn, tk = Cp, Dp
    else:
        resident = False
        # 256-aligned tiles to fill the 2x256x256 MXUs on v6e/v7x.
        tn = min(tn_max, _round_up(C, 256))
        tk = min(tk_max, _round_up(D, 256))
        Cp = _round_up(C, tn)
        Dp = _round_up(D, tk)

    # Pad, transpose to (Dp, Cp) for a clean (M,K)x(K,N) MXU feed, cast to bf16.
    w_p = jnp.pad(weight, ((0, Cp - C), (0, Dp - D))).T.astype(compute_dtype)
    b_p = jnp.pad(bias, ((0, Cp - C),)).reshape(1, Cp).astype(jnp.float32)

    return LRParams(w=w_p, b=b_p, C=C, D=D, Cp=Cp, Dp=Dp, tn=tn, tk=tk,
                    resident=resident, compute_dtype=compute_dtype)


# ----------------------------------------------------------------------------
# Forward
# ----------------------------------------------------------------------------
def lr_forward(params: LRParams, x, *, tm_max=512):
    """x: (B, input_size) -> (B, num_classes); matches nn.Linear forward."""
    B, D = x.shape
    assert D == params.D
    cd = params.compute_dtype
    itemsize = jnp.dtype(cd).itemsize
    sub = 16 if itemsize == 2 else 8       # bf16 sublane packing needs tm % 16 == 0
    out_dtype = x.dtype

    tm = min(tm_max, _round_up(B, sub))
    if params.resident:
        # Keep the double-buffered x tiles within ~16 MiB so W + x + out stay
        # comfortably under v7x's 64 MiB physical VMEM.
        tm_cap = (16 << 20) // (2 * params.Dp * itemsize)
        tm_cap = max(sub, (tm_cap // sub) * sub)
        tm = min(tm, tm_cap)
    Bp = _round_up(B, tm)

    # Only x needs per-call handling (zero K-padding contributes nothing).
    x_p = x
    if (Bp, params.Dp) != x.shape:
        x_p = jnp.pad(x, ((0, Bp - B), (0, params.Dp - D)))
    x_p = x_p.astype(cd)

    cparams_common = dict(vmem_limit_bytes=48 << 20)  # v5e defaults to 16 MiB scoped

    if params.resident:
        grid = (Bp // tm,)
        out_p = pl.pallas_call(
            _lr_resident_kernel,
            out_shape=jax.ShapeDtypeStruct((Bp, params.Cp), out_dtype),
            grid_spec=pltpu.PrefetchScalarGridSpec(
                num_scalar_prefetch=0,
                grid=grid,
                in_specs=[
                    pl.BlockSpec((tm, params.Dp), lambda i: (i, 0)),        # x streams
                    pl.BlockSpec((params.Dp, params.Cp), lambda i: (0, 0)),  # W resident
                    pl.BlockSpec((1, params.Cp), lambda i: (0, 0)),          # b resident
                ],
                out_specs=pl.BlockSpec((tm, params.Cp), lambda i: (i, 0)),
            ),
            compiler_params=pltpu.CompilerParams(
                dimension_semantics=("parallel",), **cparams_common),
        )(x_p, params.w, params.b)
    else:
        tn, tk = params.tn, params.tk
        grid = (Bp // tm, params.Cp // tn, params.Dp // tk)
        out_p = pl.pallas_call(
            _lr_tiled_kernel,
            out_shape=jax.ShapeDtypeStruct((Bp, params.Cp), out_dtype),
            grid_spec=pltpu.PrefetchScalarGridSpec(
                num_scalar_prefetch=0,
                grid=grid,
                in_specs=[
                    pl.BlockSpec((tm, tk), lambda i, j, k: (i, k)),   # x tile
                    pl.BlockSpec((tk, tn), lambda i, j, k: (k, j)),   # W^T tile
                    pl.BlockSpec((1, tn), lambda i, j, k: (0, j)),    # bias tile
                ],
                out_specs=pl.BlockSpec((tm, tn), lambda i, j, k: (i, j)),
                scratch_shapes=[pltpu.VMEM((tm, tn), jnp.float32)],
            ),
            compiler_params=pltpu.CompilerParams(
                dimension_semantics=("parallel", "parallel", "arbitrary"),
                **cparams_common),
        )(x_p, params.w, params.b)

    return out_p[:B, :params.C]


# ----------------------------------------------------------------------------
# Demo / correctness check
# ----------------------------------------------------------------------------
if __name__ == "__main__":
    # Small shapes consistent with the module: batch=8, input_size=32, classes=16.
    B, D, C = 8, 32, 16
    key = jax.random.PRNGKey(0)
    kx, kw, kb = jax.random.split(key, 3)

    x = jax.random.normal(kx, (B, D), dtype=jnp.float32)
    bound = 1.0 / jnp.sqrt(jnp.float32(D))
    weight = jax.random.uniform(kw, (C, D), minval=-bound, maxval=bound,
                                dtype=jnp.float32)
    bias = jax.random.uniform(kb, (C,), minval=-bound, maxval=bound,
                              dtype=jnp.float32)

    # Resident-W fast path (the typical LR / classifier regime).
    params = init_lr_params(weight, bias)
    out = jax.block_until_ready(lr_forward(params, x))
    ref = x @ weight.T + bias
    assert out.shape == (B, C)
    assert jnp.allclose(out, ref, atol=2e-2, rtol=2e-2), \
        float(jnp.abs(out - ref).max())

    # Also exercise the general tiled (M, N, K) path on still-small shapes by
    # forcing the resident budget to 0 and tighter tile caps.
    B2, D2, C2 = 32, 512, 384
    kx2, kw2, kb2 = jax.random.split(jax.random.PRNGKey(1), 3)
    x2 = jax.random.normal(kx2, (B2, D2), dtype=jnp.float32)
    bound2 = 1.0 / jnp.sqrt(jnp.float32(D2))
    w2 = jax.random.uniform(kw2, (C2, D2), minval=-bound2, maxval=bound2,
                            dtype=jnp.float32)
    b2 = jax.random.uniform(kb2, (C2,), minval=-bound2, maxval=bound2,
                            dtype=jnp.float32)
    params2 = init_lr_params(w2, b2, tn_max=256, tk_max=256, resident_w_bytes=0)
    out2 = jax.block_until_ready(lr_forward(params2, x2))
    ref2 = x2 @ w2.T + b2
    assert out2.shape == (B2, C2)
    assert jnp.allclose(out2, ref2, atol=3e-2, rtol=3e-2), \
        float(jnp.abs(out2 - ref2).max())

    print("KERNEL_OK")
</pallas_src>

<mosaic_0001>
module attributes {stable_mosaic.version = 11 : i64} {
  func.func @_lr_resident_kernel(%arg0: i32, %arg1: memref<16x128xbf16, #tpu.memory_space<vmem>>, %arg2: memref<128x128xbf16, #tpu.memory_space<vmem>>, %arg3: memref<1x128xf32, #tpu.memory_space<vmem>>, %arg4: memref<16x128xf32, #tpu.memory_space<vmem>>) attributes {dimension_semantics = [#tpu.dimension_semantics<parallel>], iteration_bounds = array<i64: 1>, scalar_prefetch = 0 : i64, scratch_operands = 0 : i64, tpu.core_type = #tpu.core_type<tc>, window_params = [{transform_indices = @transform_0, window_bounds = array<i64: 16, 128>}, {pipeline_mode = #tpu.pipeline_mode<synchronous>, transform_indices = @transform_1, window_bounds = array<i64: 128, 128>}, {pipeline_mode = #tpu.pipeline_mode<synchronous>, transform_indices = @transform_2, window_bounds = array<i64: 1, 128>}, {transform_indices = @transform_3, window_bounds = array<i64: 16, 128>}]} {
    %c0 = arith.constant 0 : index
    %c0_0 = arith.constant 0 : index
    %0 = vector.load %arg1[%c0, %c0_0] : memref<16x128xbf16, #tpu.memory_space<vmem>>, vector<16x128xbf16>
    %c0_1 = arith.constant 0 : index
    %c0_2 = arith.constant 0 : index
    %1 = vector.load %arg2[%c0_1, %c0_2] : memref<128x128xbf16, #tpu.memory_space<vmem>>, vector<128x128xbf16>
    %cst = arith.constant dense<0.000000e+00> : vector<16x128xf32>
    %2 = tpu.matmul %0, %1, %cst {dimension_numbers = #tpu.dot_dimension_numbers<[1], [0], [0], [1], [0, 0, 1, 1], [], []>} : vector<16x128xbf16>, vector<128x128xbf16>, vector<16x128xf32> -> vector<16x128xf32>
    %c0_3 = arith.constant 0 : index
    %c0_4 = arith.constant 0 : index
    %3 = vector.load %arg3[%c0_3, %c0_4] : memref<1x128xf32, #tpu.memory_space<vmem>>, vector<1x128xf32>
    %4 = vector.broadcast %3 : vector<1x128xf32> to vector<16x128xf32>
    %5 = arith.addf %2, %4 : vector<16x128xf32>
    %c0_5 = arith.constant 0 : index
    %c0_6 = arith.constant 0 : index
    %6 = vector.load %arg4[%c0_5, %c0_6] : memref<16x128xf32, #tpu.memory_space<vmem>>, vector<16x128xf32>
    tpu.vector_store %arg4[%c0_5, %c0_6], %5 {strides = array<i32>} : memref<16x128xf32, #tpu.memory_space<vmem>>, vector<16x128xf32>,
    return
  }
  func.func @transform_0(%arg0: i32) -> (i32, i32) {
    %c0_i32 = arith.constant 0 : i32
    %c0_i32_0 = arith.constant 0 : i32
    return %arg0, %c0_i32 : i32, i32
  }
  func.func @transform_1(%arg0: i32) -> (i32, i32) {
    %c0_i32 = arith.constant 0 : i32
    %c0_i32_0 = arith.constant 0 : i32
    %c0_i32_1 = arith.constant 0 : i32
    return %c0_i32, %c0_i32_0 : i32, i32
  }
  func.func @transform_2(%arg0: i32) -> (i32, i32) {
    %c0_i32 = arith.constant 0 : i32
    %c0_i32_0 = arith.constant 0 : i32
    %c0_i32_1 = arith.constant 0 : i32
    return %c0_i32, %c0_i32_0 : i32, i32
  }
  func.func @transform_3(%arg0: i32) -> (i32, i32) {
    %c0_i32 = arith.constant 0 : i32
    %c0_i32_0 = arith.constant 0 : i32
    return %arg0, %c0_i32 : i32, i32
  }
}

</mosaic_0001>

<llo_original>
// kernel: tpu_custom_call.1
$region0: #{tpu_custom_call.1}
  #allocation0 [shape = 'u32[]', space=smem, size = 0x4, offset = 0x4, fixed_abs, tag = 'smem constant byte address 0x4 - core index']
  #allocation1 [shape = 'u32[72,128]{1,0:T(1,128)}', space=vmem, size = 0x9000, scoped, tag = 'internal scratch']
  %s0 = inlined_call_operand.hbm [shape: bf16[16,128], index: 0, kind: input, shape index: {}]
  %s1 = inlined_call_operand.hbm [shape: bf16[128,128], index: 1, kind: input, shape index: {}]
  %s2 = inlined_call_operand.vmem [shape: f32[1,128], index: 2, kind: input, shape index: {}]
  %s3 = inlined_call_operand.hbm [shape: f32[16,128], index: 3, kind: output, shape index: {}]
  %s4 = sld [smem:[#allocation0]]
  $region30: #{tpu_custom_call.1} parent=0
    _
  %s6 = ssub.s32 1, %s4
  %s7 = scalar_select 0, %s6, %s4
  $region1: #{tpu_custom_call.1} parent=0
    #allocation2 [shape = 'u8[4096]{0}', space=vmem, size = 0x1000, scoped, tag = 'input window, operand 0, single buffered']
    #allocation3 [shape = 's32[1]{0}', space=sflag, size = 0x4, scoped, tag = 'scoped memory for tpu_custom_call.1']
    #allocation4 [shape = 's32[1]{0}', space=sflag, size = 0x4, scoped, tag = 'scoped memory for tpu_custom_call.1']
    #allocation5 [shape = 'u8[32768]{0}', space=vmem, size = 0x8000, scoped, tag = 'input window, operand 1, single buffered']
    #allocation6 [shape = 's32[1]{0}', space=sflag, size = 0x4, scoped, tag = 'scoped memory for tpu_custom_call.1']
    #allocation7 [shape = 'u8[8192]{0}', space=vmem, size = 0x2000, scoped, tag = 'output window, operand 0, single buffered']
    %8 = vsyncpa [#allocation3], 0
    %9 = vsyncpa [#allocation6], 0
    %10 = vsyncpa [#allocation4], 0
    // Predicated region
    $region2: #{tpu_custom_call.1} parent=1 // pred_check
      _
    $region3: #{tpu_custom_call.1} parent=1 // pred_check_branch
      %12 = sbr.rel (0) target = $region5
    $region4: #{tpu_custom_call.1} parent=1 // pred_region
      %14 = vsyncadd [#allocation3], 0
      %s15 = sshll.u32 %s0, 4
      %s16 = int_to_ptr.hbm [resolvable:$true] %s15
      %s17 = sshll.u32 [#allocation2], 4
      %s18 = int_to_ptr.vmem [resolvable:$true] %s17
      %23 = dma.hbm_to_vmem [thread:$0]  %s16, 128, %s18, [#allocation3], 64, 64, 4
    $region5: #{tpu_custom_call.1} parent=1 // pred_fallthru
      _
    // Predicated region
    $region6: #{tpu_custom_call.1} parent=1 // pred_check
      _
    $region7: #{tpu_custom_call.1} parent=1 // pred_check_branch
      %25 = sbr.rel (0) target = $region9
    $region8: #{tpu_custom_call.1} parent=1 // pred_region
      %27 = vsyncadd [#allocation6], 0
      %s28 = sshll.u32 %s1, 4
      %s29 = int_to_ptr.hbm [resolvable:$true] %s28
      %s30 = sshll.u32 [#allocation5], 4
      %s31 = int_to_ptr.vmem [resolvable:$true] %s30
      %36 = dma.hbm_to_vmem [thread:$0]  %s29, 1024, %s31, [#allocation6], 64, 64, 4
    $region9: #{tpu_custom_call.1} parent=1 // pred_fallthru
      _
    // Predicated region
    $region10: #{tpu_custom_call.1} parent=1 // pred_check
      _
    $region11: #{tpu_custom_call.1} parent=1 // pred_check_branch
      %38 = sbr.rel (0) target = $region13
    $region12: #{tpu_custom_call.1} parent=1 // pred_region
      _
    $region13: #{tpu_custom_call.1} parent=1 // pred_fallthru
      _
    // Predicated region
    $region14: #{tpu_custom_call.1} parent=1 // pred_check
      _
    $region15: #{tpu_custom_call.1} parent=1 // pred_check_branch
      %40 = sbr.rel (0) target = $region17
    $region16: #{tpu_custom_call.1} parent=1 // pred_region
      %42 = dma.done [#allocation3], 128
    $region17: #{tpu_custom_call.1} parent=1 // pred_fallthru
      _
    // Predicated region
    $region18: #{tpu_custom_call.1} parent=1 // pred_check
      _
    $region19: #{tpu_custom_call.1} parent=1 // pred_check_branch
      %44 = sbr.rel (0) target = $region21
    $region20: #{tpu_custom_call.1} parent=1 // pred_region
      %46 = dma.done [#allocation6], 1024
    $region21: #{tpu_custom_call.1} parent=1 // pred_fallthru
      _
    %v47 = vld [vmem:[#allocation2] sm:$0xf]
    %v48 = vld [vmem:[#allocation2 + $0x4] sm:$0xf]
    %v49 = vld [vmem:[#allocation5] sm:$0xf]
    %v50 = vld [vmem:[#allocation5 + $0x4] sm:$0xf]
    %v51 = vld [vmem:[#allocation5 + $0x8] sm:$0xf]
    %v52 = vld [vmem:[#allocation5 + $0xc] sm:$0xf]
    %v53 = vld [vmem:[#allocation5 + $0x10] sm:$0xf]
    %v54 = vld [vmem:[#allocation5 + $0x14] sm:$0xf]
    %v55 = vld [vmem:[#allocation5 + $0x18] sm:$0xf]
    %v56 = vld [vmem:[#allocation5 + $0x1c] sm:$0xf]
    %v57 = vld [vmem:[#allocation5 + $0x20] sm:$0xf]
    %v58 = vld [vmem:[#allocation5 + $0x24] sm:$0xf]
    %v59 = vld [vmem:[#allocation5 + $0x28] sm:$0xf]
    %v60 = vld [vmem:[#allocation5 + $0x2c] sm:$0xf]
    %v61 = vld [vmem:[#allocation5 + $0x30] sm:$0xf]
    %v62 = vld [vmem:[#allocation5 + $0x34] sm:$0xf]
    %v63 = vld [vmem:[#allocation5 + $0x38] sm:$0xf]
    %v64 = vld [vmem:[#allocation5 + $0x3c] sm:$0xf]
    %v65 = vld [vmem:[%s2] sm:$0x1]
    %v67 = vperm.slane %v65, 0
    %v71 = vunpack.c.l.b16 %v47
    %v72 = vunpack.c.l.b16 %v48
    %v73 = vpack.c.b16 %v72, %v71
    %v91 = vunpack.c.l.b16 %v49
    %v92 = vunpack.c.l.b16 %v50
    %v93 = vunpack.c.l.b16 %v51
    %v94 = vunpack.c.l.b16 %v52
    %v95 = vunpack.c.l.b16 %v53
    %v96 = vunpack.c.l.b16 %v54
    %v97 = vunpack.c.l.b16 %v55
    %v98 = vunpack.c.l.b16 %v56
    %v99 = vunpack.c.l.b16 %v57
    %v100 = vunpack.c.l.b16 %v58
    %v101 = vunpack.c.l.b16 %v59
    %v102 = vunpack.c.l.b16 %v60
    %v103 = vunpack.c.l.b16 %v61
    %v104 = vunpack.c.l.b16 %v62
    %v105 = vunpack.c.l.b16 %v63
    %v106 = vunpack.c.l.b16 %v64
    %v107 = vpack.c.b16 %v92, %v91
    %v108 = vpack.c.b16 %v94, %v93
    %v109 = vpack.c.b16 %v96, %v95
    %v110 = vpack.c.b16 %v98, %v97
    %v111 = vpack.c.b16 %v100, %v99
    %v112 = vpack.c.b16 %v102, %v101
    %v113 = vpack.c.b16 %v104, %v103
    %v114 = vpack.c.b16 %v106, %v105
    %123 = vmatpush.bf16.msra.mxu0 %v114
    %124 = vmatpush.bf16.msra.mxu0 %v113
    %125 = vmatpush.bf16.msra.mxu0 %v112
    %126 = vmatpush.bf16.msra.mxu0 %v111
    %127 = vmatpush.bf16.msra.mxu0 %v110
    %128 = vmatpush.bf16.msra.mxu0 %v109
    %129 = vmatpush.bf16.msra.mxu0 %v108
    %130 = vmatpush.bf16.msra.mxu0 %v107
    %131 = vmatmul.bf16.gmra.mxu0 %v73
    %v132 = vpop.f32.mrf.mxu0
    %v133 = vadd.f32 %v67, %v132
    %v134 = vpop.f32.mrf.mxu0
    %v135 = vadd.f32 %v67, %v134
    %136 = vdwg.mxu0
    %137 = vst [vmem:[#allocation7] sm:$0xff] %v133
    %138 = vst [vmem:[#allocation7 + $0x8] sm:$0xff] %v135
    // Predicated region
    $region22: #{tpu_custom_call.1} parent=1 // pred_check
      _
    $region23: #{tpu_custom_call.1} parent=1 // pred_check_branch
      %140 = sbr.rel (0) target = $region25
    $region24: #{tpu_custom_call.1} parent=1 // pred_region
      %142 = vsyncadd [#allocation4], 0
      %s143 = sshll.u32 [#allocation7], 4
      %s144 = int_to_ptr.vmem [resolvable:$true] %s143
      %s145 = sshll.u32 %s3, 4
      %s146 = int_to_ptr.hbm [resolvable:$true] %s145
      %151 = dma.vmem_to_hbm [thread:$0]  %s144, 256, %s146, [#allocation4], 128, 128, 8
    $region25: #{tpu_custom_call.1} parent=1 // pred_fallthru
      _
    // Predicated region
    $region26: #{tpu_custom_call.1} parent=1 // pred_check
      _
    $region27: #{tpu_custom_call.1} parent=1 // pred_check_branch
      %153 = sbr.rel (0) target = $region29
    $region28: #{tpu_custom_call.1} parent=1 // pred_region
      %155 = dma.done [#allocation4], 256
    $region29: #{tpu_custom_call.1} parent=1 // pred_fallthru
      _
    %156 = vsyncpa [#allocation3], 1
    %157 = vsyncpa [#allocation6], 1
    %158 = vsyncpa [#allocation4], 1

</llo_original>
